<compile_context>
chip_gen: v7x
topology: tpu7x:2x2x1
jax: 0.10.0
libtpu: 0.0.40
codegen_flags: <defaults>
</compile_context>

<pallas_src>
import jax
import jax.numpy as jnp
from jax.experimental import pallas as pl
from jax.experimental.pallas import tpu as pltpu


def _round_up(x, m):
    return ((x + m - 1) // m) * m


def _cdiv(a, b):
    return -(-a // b)


# ---------------------------------------------------------------------------
# Kernel body: one pass over a (tile_r, 128) block producing all 7 outputs.
# Compute (including the divide) hides entirely under the DMAs.
# ---------------------------------------------------------------------------
def _eltwise_kernel(a_ref, b_ref,
                    add_ref, sub_ref, mul_ref, div_ref,
                    gt_ref, lt_ref, eq_ref):
    a = a_ref[...]
    b = b_ref[...]
    add_ref[...] = a + b
    sub_ref[...] = a - b
    mul_ref[...] = a * b
    # torch.div(a, torch.add(b, 1e-05)) — exact divide (perf-neutral: HBM-bound).
    div_ref[...] = a / (b + 1e-05)
    gt_ref[...] = (a > b).astype(gt_ref.dtype)
    lt_ref[...] = (a < b).astype(lt_ref.dtype)
    eq_ref[...] = (a == b).astype(eq_ref.dtype)


# ---------------------------------------------------------------------------
# One-time probe: can Mosaic emit bool kernel outputs (incl. ragged blocks)?
# If yes, masks are written as bool directly (saves ~6 B/elem of convert
# traffic); if not, fall back to int8 masks + a wrapper-side convert.
# ---------------------------------------------------------------------------
_MASK_DTYPE_CACHE = {}


def _mask_dtype():
    if "dtype" not in _MASK_DTYPE_CACHE:
        def _probe(x_ref, o_ref):
            o_ref[...] = x_ref[...] > 0.0
        try:
            fn = pl.pallas_call(
                _probe,
                out_shape=jax.ShapeDtypeStruct((48, 128), jnp.bool_),
                grid=(2,),
                in_specs=[pl.BlockSpec((32, 128), lambda i: (i, 0))],
                out_specs=pl.BlockSpec((32, 128), lambda i: (i, 0)),
            )
            got = jax.block_until_ready(fn(jnp.ones((48, 128), jnp.float32)))
            ok = bool(jnp.all(got))
            _MASK_DTYPE_CACHE["dtype"] = jnp.bool_ if ok else jnp.int8
        except Exception:
            _MASK_DTYPE_CACHE["dtype"] = jnp.int8
    return _MASK_DTYPE_CACHE["dtype"]


# ---------------------------------------------------------------------------
# Per-generation tiling: (target_tile_rows, vmem_limit_bytes, min_grid_steps).
# Per-step traffic is 27 B/elem * tile_r * 128; double-buffered VMEM footprint
# across the 9 streams is tile_r * 6912 B (2048 rows ~ 14.2 MiB, 4096 ~ 28 MiB).
# ---------------------------------------------------------------------------
def _tile_params():
    try:
        kind = jax.devices()[0].device_kind.lower()
    except Exception:
        kind = ""
    mib = 1024 * 1024
    if "v5 lite" in kind or "v5e" in kind or "v5lite" in kind:
        # v5e scoped-VMEM default is 16 MiB; raise it so the 2048-row tile fits.
        return 2048, 32 * mib, 1
    if "7" in kind:
        # v7x: 3.2 TB/s HBM wants the largest tiles, but VMEM is 64 MiB and the
        # grid needs enough steps for the 2 TensorCores to share the work.
        return 4096, 48 * mib, 8
    # v6e (and default): 2048-row tiles sit on the ~85% HBM-roofline plateau.
    return 2048, 48 * mib, 1


def _choose_tile_rows(rows, target_tile_r, min_steps):
    # Multiples of 32 keep int8/bool outputs on full (32,128) native tiles.
    tile_r = min(target_tile_r, _round_up(rows, 32))
    if min_steps > 1 and rows > 32 * min_steps:
        tile_r = min(tile_r, max(32, _round_up(_cdiv(rows, min_steps), 32)))
    return tile_r


def _run_slab(a2, b2, mask_dtype):
    rows, lane = a2.shape
    target_tile_r, vmem_limit, min_steps = _tile_params()
    tile_r = _choose_tile_rows(rows, target_tile_r, min_steps)
    grid = (_cdiv(rows, tile_r),)               # ragged last row-tile is masked
    spec = pl.BlockSpec((tile_r, lane), lambda i: (i, 0))

    slab = (rows, lane)
    fdt = a2.dtype
    out_shapes = (
        jax.ShapeDtypeStruct(slab, fdt),        # add
        jax.ShapeDtypeStruct(slab, fdt),        # sub
        jax.ShapeDtypeStruct(slab, fdt),        # mul
        jax.ShapeDtypeStruct(slab, fdt),        # div
        jax.ShapeDtypeStruct(slab, mask_dtype),  # gt
        jax.ShapeDtypeStruct(slab, mask_dtype),  # lt
        jax.ShapeDtypeStruct(slab, mask_dtype),  # eq
    )
    n = rows * lane
    itemsize = jnp.dtype(fdt).itemsize
    cost = pl.CostEstimate(flops=7 * n, transcendentals=n,
                           bytes_accessed=(6 * itemsize + 3) * n)

    return pl.pallas_call(
        _eltwise_kernel,
        out_shape=out_shapes,
        grid=grid,
        in_specs=[spec, spec],
        out_specs=[spec] * 7,
        compiler_params=pltpu.CompilerParams(
            dimension_semantics=("parallel",),
            vmem_limit_bytes=vmem_limit),
        cost_estimate=cost,
    )(a2, b2)


def _jnp_reference(a, b):
    return (a + b, a - b, a * b, a / (b + 1e-05), a > b, a < b, a == b)


def pt_module_forward(a, b):
    """Pallas implementation of PtModule.forward((a, b))."""
    assert a.shape == b.shape and a.dtype == b.dtype
    assert jnp.issubdtype(a.dtype, jnp.floating), "floating-point inputs only"
    orig_shape = a.shape
    n = a.size
    lane = 128

    n_main = (n // lane) * lane
    if n_main == 0:
        # Fewer than 128 elements: a kernel launch is pure overhead.
        return _jnp_reference(a, b)

    mask_dtype = _mask_dtype()
    a_flat = a.reshape(-1)
    b_flat = b.reshape(-1)

    # Lane-aligned prefix goes through the kernel (metadata-only reshape when
    # the whole array is aligned).
    a_main = a_flat if n_main == n else a_flat[:n_main]
    b_main = b_flat if n_main == n else b_flat[:n_main]
    a2 = a_main.reshape(-1, lane)
    b2 = b_main.reshape(-1, lane)
    try:
        outs = _run_slab(a2, b2, mask_dtype)
    except Exception:
        if mask_dtype == jnp.int8:
            raise
        # Belt-and-suspenders: retry with int8 masks if bool outputs failed.
        mask_dtype = jnp.int8
        _MASK_DTYPE_CACHE["dtype"] = jnp.int8
        outs = _run_slab(a2, b2, mask_dtype)

    if n_main == n:
        flat = [o.reshape(-1) for o in outs]
    else:
        # <=127-element tail: plain jnp instead of a full pad copy of inputs.
        at, bt = a_flat[n_main:], b_flat[n_main:]
        tail = (at + bt, at - bt, at * bt, at / (bt + 1e-05),
                (at > bt).astype(mask_dtype),
                (at < bt).astype(mask_dtype),
                (at == bt).astype(mask_dtype))
        flat = [jnp.concatenate([o.reshape(-1), t]) for o, t in zip(outs, tail)]

    def _fin(x, to_bool=False):
        x = x.reshape(orig_shape)
        if to_bool and x.dtype != jnp.bool_:
            x = x.astype(jnp.bool_)     # only taken on the int8-fallback path
        return x

    return (_fin(flat[0]), _fin(flat[1]), _fin(flat[2]), _fin(flat[3]),
            _fin(flat[4], True), _fin(flat[5], True), _fin(flat[6], True))


def _check(a, b):
    got = jax.block_until_ready(pt_module_forward(a, b))
    want = _jnp_reference(a, b)
    for idx, (g, w) in enumerate(zip(got, want)):
        assert g.shape == w.shape, (idx, g.shape, w.shape)
        assert g.dtype == w.dtype, (idx, g.dtype, w.dtype)
        if g.dtype == jnp.bool_:
            assert bool(jnp.all(g == w)), idx
        else:
            assert bool(jnp.allclose(g, w, rtol=1e-6, atol=1e-6)), idx


if __name__ == "__main__":
    key = jax.random.PRNGKey(0)
    ks = jax.random.split(key, 8)

    # Primary small NCHW-like case (numel % 128 == 0, single ragged tile).
    a = jax.random.normal(ks[0], (2, 4, 16, 16), dtype=jnp.float32)
    b = jax.random.normal(ks[1], (2, 4, 16, 16), dtype=jnp.float32)
    b = b.at[0, 0, 0, :].set(a[0, 0, 0, :])      # make the eq mask non-trivial
    _check(a, b)

    # Multi-tile pipelined path with a ragged last row-tile (2400 rows of 128).
    a2 = jax.random.normal(ks[2], (8, 300, 128), dtype=jnp.float32)
    b2 = jax.random.normal(ks[3], (8, 300, 128), dtype=jnp.float32)
    b2 = b2.at[1, 2, :].set(a2[1, 2, :])
    _check(a2, b2)

    # numel % 128 != 0: aligned prefix through the kernel, 44-element jnp tail.
    a3 = jax.random.normal(ks[4], (2, 3, 50), dtype=jnp.float32)
    b3 = jax.random.normal(ks[5], (2, 3, 50), dtype=jnp.float32)
    _check(a3, b3)

    # Tiny (<128 elements): pure-jnp fallback.
    a4 = jax.random.normal(ks[6], (5, 20), dtype=jnp.float32)
    b4 = jax.random.normal(ks[7], (5, 20), dtype=jnp.float32)
    _check(a4, b4)

    print("KERNEL_OK")
</pallas_src>

<mosaic_0001>
module attributes {stable_mosaic.version = 11 : i64} {
  func.func @_probe(%arg0: i32, %arg1: memref<32x128xf32, #tpu.memory_space<vmem>>, %arg2: memref<32x128xi32, #tpu.memory_space<vmem>>) attributes {dimension_semantics = [#tpu.dimension_semantics<arbitrary>], iteration_bounds = array<i64: 2>, scalar_prefetch = 0 : i64, scratch_operands = 0 : i64, tpu.core_type = #tpu.core_type<tc>, window_params = [{transform_indices = @transform_0, window_bounds = array<i64: 32, 128>}, {transform_indices = @transform_1, window_bounds = array<i64: 32, 128>}]} {
    %c0 = arith.constant 0 : index
    %c0_0 = arith.constant 0 : index
    %0 = vector.load %arg1[%c0, %c0_0] : memref<32x128xf32, #tpu.memory_space<vmem>>, vector<32x128xf32>
    %cst = arith.constant 0.000000e+00 : f32
    %1 = vector.broadcast %cst : f32 to vector<32x128xf32>
    %2 = arith.cmpf ogt, %0, %1 : vector<32x128xf32>
    %c0_1 = arith.constant 0 : index
    %c0_2 = arith.constant 0 : index
    %3 = vector.load %arg2[%c0_1, %c0_2] : memref<32x128xi32, #tpu.memory_space<vmem>>, vector<32x128xi32>
    %4 = arith.extui %2 : vector<32x128xi1> to vector<32x128xi32>
    %cst_3 = arith.constant dense<0> : vector<32x128xi32>
    %5 = arith.cmpi ne, %3, %cst_3 : vector<32x128xi32>
    tpu.vector_store %arg2[%c0_1, %c0_2], %4 {strides = array<i32>} : memref<32x128xi32, #tpu.memory_space<vmem>>, vector<32x128xi32>,
    return
  }
  func.func @transform_0(%arg0: i32) -> (i32, i32) {
    %c0_i32 = arith.constant 0 : i32
    %c0_i32_0 = arith.constant 0 : i32
    return %arg0, %c0_i32 : i32, i32
  }
  func.func @transform_1(%arg0: i32) -> (i32, i32) {
    %c0_i32 = arith.constant 0 : i32
    %c0_i32_0 = arith.constant 0 : i32
    return %arg0, %c0_i32 : i32, i32
  }
}

module attributes {stable_mosaic.version = 11 : i64} {
  func.func @_eltwise_kernel(%arg0: i32, %arg1: memref<32x128xf32, #tpu.memory_space<vmem>>, %arg2: memref<32x128xf32, #tpu.memory_space<vmem>>, %arg3: memref<32x128xf32, #tpu.memory_space<vmem>>, %arg4: memref<32x128xf32, #tpu.memory_space<vmem>>, %arg5: memref<32x128xf32, #tpu.memory_space<vmem>>, %arg6: memref<32x128xf32, #tpu.memory_space<vmem>>, %arg7: memref<32x128xi8, #tpu.memory_space<vmem>>, %arg8: memref<32x128xi8, #tpu.memory_space<vmem>>, %arg9: memref<32x128xi8, #tpu.memory_space<vmem>>) attributes {dimension_semantics = [#tpu.dimension_semantics<parallel>], iteration_bounds = array<i64: 1>, scalar_prefetch = 0 : i64, scratch_operands = 0 : i64, tpu.core_type = #tpu.core_type<tc>, window_params = [{transform_indices = @transform_0, window_bounds = array<i64: 32, 128>}, {transform_indices = @transform_1, window_bounds = array<i64: 32, 128>}, {transform_indices = @transform_2, window_bounds = array<i64: 32, 128>}, {transform_indices = @transform_3, window_bounds = array<i64: 32, 128>}, {transform_indices = @transform_4, window_bounds = array<i64: 32, 128>}, {transform_indices = @transform_5, window_bounds = array<i64: 32, 128>}, {transform_indices = @transform_6, window_bounds = array<i64: 32, 128>}, {transform_indices = @transform_7, window_bounds = array<i64: 32, 128>}, {transform_indices = @transform_8, window_bounds = array<i64: 32, 128>}]} {
    %c0 = arith.constant 0 : index
    %c0_0 = arith.constant 0 : index
    %0 = vector.load %arg1[%c0, %c0_0] : memref<32x128xf32, #tpu.memory_space<vmem>>, vector<32x128xf32>
    %c0_1 = arith.constant 0 : index
    %c0_2 = arith.constant 0 : index
    %1 = vector.load %arg2[%c0_1, %c0_2] : memref<32x128xf32, #tpu.memory_space<vmem>>, vector<32x128xf32>
    %2 = arith.addf %0, %1 : vector<32x128xf32>
    %c0_3 = arith.constant 0 : index
    %c0_4 = arith.constant 0 : index
    %3 = vector.load %arg3[%c0_3, %c0_4] : memref<32x128xf32, #tpu.memory_space<vmem>>, vector<32x128xf32>
    tpu.vector_store %arg3[%c0_3, %c0_4], %2 {strides = array<i32>} : memref<32x128xf32, #tpu.memory_space<vmem>>, vector<32x128xf32>,
    %4 = arith.subf %0, %1 : vector<32x128xf32>
    %c0_5 = arith.constant 0 : index
    %c0_6 = arith.constant 0 : index
    %5 = vector.load %arg4[%c0_5, %c0_6] : memref<32x128xf32, #tpu.memory_space<vmem>>, vector<32x128xf32>
    tpu.vector_store %arg4[%c0_5, %c0_6], %4 {strides = array<i32>} : memref<32x128xf32, #tpu.memory_space<vmem>>, vector<32x128xf32>,
    %6 = arith.mulf %0, %1 : vector<32x128xf32>
    %c0_7 = arith.constant 0 : index
    %c0_8 = arith.constant 0 : index
    %7 = vector.load %arg5[%c0_7, %c0_8] : memref<32x128xf32, #tpu.memory_space<vmem>>, vector<32x128xf32>
    tpu.vector_store %arg5[%c0_7, %c0_8], %6 {strides = array<i32>} : memref<32x128xf32, #tpu.memory_space<vmem>>, vector<32x128xf32>,
    %cst = arith.constant 9.99999974E-6 : f32
    %8 = vector.broadcast %cst : f32 to vector<32x128xf32>
    %9 = arith.addf %1, %8 : vector<32x128xf32>
    %10 = arith.divf %0, %9 : vector<32x128xf32>
    %c0_9 = arith.constant 0 : index
    %c0_10 = arith.constant 0 : index
    %11 = vector.load %arg6[%c0_9, %c0_10] : memref<32x128xf32, #tpu.memory_space<vmem>>, vector<32x128xf32>
    tpu.vector_store %arg6[%c0_9, %c0_10], %10 {strides = array<i32>} : memref<32x128xf32, #tpu.memory_space<vmem>>, vector<32x128xf32>,
    %12 = arith.cmpf ogt, %0, %1 : vector<32x128xf32>
    %13 = arith.extui %12 : vector<32x128xi1> to vector<32x128xi8>
    %c0_11 = arith.constant 0 : index
    %c0_12 = arith.constant 0 : index
    %14 = vector.load %arg7[%c0_11, %c0_12] : memref<32x128xi8, #tpu.memory_space<vmem>>, vector<32x128xi8>
    tpu.vector_store %arg7[%c0_11, %c0_12], %13 {strides = array<i32>} : memref<32x128xi8, #tpu.memory_space<vmem>>, vector<32x128xi8>,
    %15 = arith.cmpf olt, %0, %1 : vector<32x128xf32>
    %16 = arith.extui %15 : vector<32x128xi1> to vector<32x128xi8>
    %c0_13 = arith.constant 0 : index
    %c0_14 = arith.constant 0 : index
    %17 = vector.load %arg8[%c0_13, %c0_14] : memref<32x128xi8, #tpu.memory_space<vmem>>, vector<32x128xi8>
    tpu.vector_store %arg8[%c0_13, %c0_14], %16 {strides = array<i32>} : memref<32x128xi8, #tpu.memory_space<vmem>>, vector<32x128xi8>,
    %18 = arith.cmpf oeq, %0, %1 : vector<32x128xf32>
    %19 = arith.extui %18 : vector<32x128xi1> to vector<32x128xi8>
    %c0_15 = arith.constant 0 : index
    %c0_16 = arith.constant 0 : index
    %20 = vector.load %arg9[%c0_15, %c0_16] : memref<32x128xi8, #tpu.memory_space<vmem>>, vector<32x128xi8>
    tpu.vector_store %arg9[%c0_15, %c0_16], %19 {strides = array<i32>} : memref<32x128xi8, #tpu.memory_space<vmem>>, vector<32x128xi8>,
    return
  }
  func.func @transform_0(%arg0: i32) -> (i32, i32) {
    %c0_i32 = arith.constant 0 : i32
    %c0_i32_0 = arith.constant 0 : i32
    return %arg0, %c0_i32 : i32, i32
  }
  func.func @transform_1(%arg0: i32) -> (i32, i32) {
    %c0_i32 = arith.constant 0 : i32
    %c0_i32_0 = arith.constant 0 : i32
    return %arg0, %c0_i32 : i32, i32
  }
  func.func @transform_2(%arg0: i32) -> (i32, i32) {
    %c0_i32 = arith.constant 0 : i32
    %c0_i32_0 = arith.constant 0 : i32
    return %arg0, %c0_i32 : i32, i32
  }
  func.func @transform_3(%arg0: i32) -> (i32, i32) {
    %c0_i32 = arith.constant 0 : i32
    %c0_i32_0 = arith.constant 0 : i32
    return %arg0, %c0_i32 : i32, i32
  }
  func.func @transform_4(%arg0: i32) -> (i32, i32) {
    %c0_i32 = arith.constant 0 : i32
    %c0_i32_0 = arith.constant 0 : i32
    return %arg0, %c0_i32 : i32, i32
  }
  func.func @transform_5(%arg0: i32) -> (i32, i32) {
    %c0_i32 = arith.constant 0 : i32
    %c0_i32_0 = arith.constant 0 : i32
    return %arg0, %c0_i32 : i32, i32
  }
  func.func @transform_6(%arg0: i32) -> (i32, i32) {
    %c0_i32 = arith.constant 0 : i32
    %c0_i32_0 = arith.constant 0 : i32
    return %arg0, %c0_i32 : i32, i32
  }
  func.func @transform_7(%arg0: i32) -> (i32, i32) {
    %c0_i32 = arith.constant 0 : i32
    %c0_i32_0 = arith.constant 0 : i32
    return %arg0, %c0_i32 : i32, i32
  }
  func.func @transform_8(%arg0: i32) -> (i32, i32) {
    %c0_i32 = arith.constant 0 : i32
    %c0_i32_0 = arith.constant 0 : i32
    return %arg0, %c0_i32 : i32, i32
  }
}

</mosaic_0001>

<llo_original>
// kernel: tpu_custom_call.1
$region0: #{tpu_custom_call.1}
  #allocation0 [shape = 'u32[]', space=smem, size = 0x4, offset = 0x4, fixed_abs, tag = 'smem constant byte address 0x4 - core index']
  #allocation1 [shape = 'u32[144,128]{1,0:T(1,128)}', space=vmem, size = 0x12000, scoped, tag = 'internal scratch']
  %s0 = inlined_call_operand.hbm [shape: f32[48,128], index: 0, kind: input, shape index: {}]
  %s1 = inlined_call_operand.vmem [shape: s32[48,128], index: 1, kind: output, shape index: {}]
  %s2 = sld [smem:[#allocation0]]
  $region89: #{tpu_custom_call.1} parent=0
    _
  %s4 = ssub.s32 1, %s2
  %s5 = scalar_select 0, %s4, %s2
  $region1: #{tpu_custom_call.1} parent=0
    #allocation2 [shape = 'u8[32768]{0}', space=vmem, size = 0x8000, scoped, tag = 'input window, operand 0']
    #allocation3 [shape = 's32[2]{0}', space=sflag, size = 0x8, scoped, tag = 'scoped memory for tpu_custom_call.1']
    #allocation4 [shape = 'u8[32768]{0}', space=vmem, size = 0x8000, scoped, tag = 'output window, operand 0']
    %6 = vsyncpa [#allocation3], 0
    %s7 = scalar_lea.sflag [#allocation3], 1
    %8 = vsyncpa %s7, 0
    loop: start=0, step=1, limit=4
    $region2: #{tpu_custom_call.1} parent=1 // loop_pre_header
      _
    $region3: #{tpu_custom_call.1} parent=1 // loop_header
      %s10 = sphi 0, %s14
      %p11 = scmp.ge.s32.totalorder %s10, 4
      %s20 = sphi 0, %s22
      %s23 = sphi 0, %s20
      %s24 = sphi 0, %s23
      %s40 = sphi 0, %s24
      %s46 = sphi 0, %s48
      %s49 = sphi 0, %s46
      %s50 = sphi 0, %s49
      %s66 = sphi 0, %s50
    $region4: #{tpu_custom_call.1} parent=1 // loop_header_branch
      %13 = sbr.rel (%p11) target = $region8
    $region5: #{tpu_custom_call.1} parent=1 // loop_body
      %s15 = ssub.s32 %s10, 1
      %s16 = ssub.s32 %s10, 2
      %s17 = sadd.s32 %s10, 1
      %s18 = ssub.s32 %s10, %s17
      %p19 = scmp.eq.s32.totalorder %s18, 0
      %s21 = sadd.s32 %s20, 1
      %s22 = scalar_select %p19, %s20, %s21
      %p25 = pneg %p19
      %p26 = scmp.eq.s32.totalorder %s10, 1
      %p27 = por %p25, %p26
      %p28 = scmp.ne.s32.totalorder %s20, %s23
      %p29 = scmp.eq.s32.totalorder %s10, 0
      %p30 = por %p28, %p29
      %p31 = scmp.ne.s32.totalorder %s20, %s23
      %p32 = scmp.eq.s32.totalorder %s15, 1
      %p33 = por %p31, %p32
      %p34 = scmp.ne.s32.totalorder %s23, %s24
      %p35 = scmp.eq.s32.totalorder %s15, 0
      %p36 = por %p34, %p35
      %p37 = scmp.ne.s32.totalorder %s23, %s24
      %p38 = scmp.eq.s32.totalorder %s16, 1
      %p39 = por %p37, %p38
      %p41 = scmp.ne.s32.totalorder %s24, %s40
      %p42 = scmp.eq.s32.totalorder %s16, 0
      %p43 = por %p41, %p42
      %s44 = ssub.s32 %s10, %s17
      %p45 = scmp.eq.s32.totalorder %s44, 0
      %s47 = sadd.s32 %s46, 1
      %s48 = scalar_select %p45, %s46, %s47
      %p51 = pneg %p45
      %p52 = scmp.eq.s32.totalorder %s10, 1
      %p53 = por %p51, %p52
      %p54 = scmp.ne.s32.totalorder %s46, %s49
      %p55 = scmp.eq.s32.totalorder %s10, 0
      %p56 = por %p54, %p55
      %p57 = scmp.ne.s32.totalorder %s46, %s49
      %p58 = scmp.eq.s32.totalorder %s15, 1
      %p59 = por %p57, %p58
      %p60 = scmp.ne.s32.totalorder %s49, %s50
      %p61 = scmp.eq.s32.totalorder %s15, 0
      %p62 = por %p60, %p61
      %p63 = scmp.ne.s32.totalorder %s49, %s50
      %p64 = scmp.eq.s32.totalorder %s16, 1
      %p65 = por %p63, %p64
      %p67 = scmp.ne.s32.totalorder %s50, %s66
      %p68 = scmp.eq.s32.totalorder %s16, 0
      %p69 = por %p67, %p68
      %p70 = scmp.le.s32.totalorder 1, %s10
      %p71 = scmp.lt.s32.totalorder %s10, 3
      %p72 = pnand %p70, %p71
      %p73 = pneg %p72
      // Predicated region
      $region9: #{tpu_custom_call.1} parent=5 // pred_check
        _
      $region10: #{tpu_custom_call.1} parent=5 // pred_check_branch
        %75 = sbr.rel (%p72) target = $region12
      $region11: #{tpu_custom_call.1} parent=5 // pred_region
        %s76 = ssub.s32 %s10, 1
      $region12: #{tpu_custom_call.1} parent=5 // pred_fallthru
        _
      %p77 = scmp.lt.s32.totalorder %s10, 2
      // Predicated region
      $region13: #{tpu_custom_call.1} parent=5 // pred_check
        %p78 = pneg %p77
      $region14: #{tpu_custom_call.1} parent=5 // pred_check_branch
        %80 = sbr.rel (%p78) target = $region16
      $region15: #{tpu_custom_call.1} parent=5 // pred_region
        // Predicated region
        $region17: #{tpu_custom_call.1} parent=15 // pred_check
          %p81 = pneg %p30
        $region18: #{tpu_custom_call.1} parent=15 // pred_check_branch
          %83 = sbr.rel (%p81) target = $region20
        $region19: #{tpu_custom_call.1} parent=15 // pred_region
          %s84 = sand.u32 %s20, 1
          %s85 = scalar_lea.sflag [#allocation3], %s84
          %s86 = sand.u32 %s20, 1
          %s87 = smul.addr %s86, 32
          %s88 = scalar_lea.vmem [#allocation2], %s87
          %s89 = smul.u32 4, %s10
          %s90 = ssub.s32 6, %s89
          %p91 = scmp.lt.s32.totalorder %s90, 4
          %s92 = scalar_select %p91, %s90, 4
          %s93 = smul.u32 128, %s92
          %s95 = ssub.s32 512, %s93
          %96 = vsyncadd %s85, %s95
          %p97 = scmp.ne.s32.totalorder 0, %s93
          %s98 = smul.addr %s89, 128
          %s99 = scalar_lea.hbm %s0, %s98
          %s100 = smul.u32 8, %s92
          %s101 = sshll.u32 %s88, 4
          %s102 = int_to_ptr.vmem [resolvable:$true] %s101
          %s103 = sshll.u32 %s100, 4
          %107 = dma.hbm_to_vmem [thread:$0]  (%p97), %s99, %s103, %s102, %s85, 128, 128, 8
        $region20: #{tpu_custom_call.1} parent=15 // pred_fallthru
          _
      $region16: #{tpu_custom_call.1} parent=5 // pred_fallthru
        _
      %p108 = scmp.le.s32.totalorder 1, %s10
      %p109 = scmp.lt.s32.totalorder %s10, 3
      %p110 = pnand %p108, %p109
      %p111 = pneg %p110
      // Predicated region
      $region21: #{tpu_custom_call.1} parent=5 // pred_check
        _
      $region22: #{tpu_custom_call.1} parent=5 // pred_check_branch
        %113 = sbr.rel (%p110) target = $region24
      $region23: #{tpu_custom_call.1} parent=5 // pred_region
        %s114 = ssub.s32 %s10, 1
        %s115 = sand.u32 %s23, 1
        %s116 = scalar_lea.sflag [#allocation3], %s115
        %s117 = sand.u32 %s23, 1
        %s118 = smul.addr %s117, 32
        %s119 = scalar_lea.vmem [#allocation2], %s118
        // Predicated region
        $region25: #{tpu_custom_call.1} parent=23 // pred_check
          %p120 = pneg %p36
        $region26: #{tpu_custom_call.1} parent=23 // pred_check_branch
          %122 = sbr.rel (%p120) target = $region28
        $region27: #{tpu_custom_call.1} parent=23 // pred_region
          %123 = dma.done %s116, 512
        $region28: #{tpu_custom_call.1} parent=23 // pred_fallthru
          _
        %s124 = sand.u32 %s23, 1
        %s125 = scalar_lea.sflag [#allocation3], %s124
        %s126 = sand.u32 %s23, 1
        %s127 = smul.addr %s126, 32
        %s128 = scalar_lea.vmem [#allocation2], %s127
        %p129 = pneg %p36
        %p130 = pneg %p33
        %p131 = pneg %p62
        %p132 = pneg %p59
        %s133 = sand.u32 %s49, 1
        %s134 = sand.u32 %s49, 1
        %s135 = smul.addr %s134, 32
        %s136 = scalar_lea.vmem [#allocation4], %s135
        %s137 = smul.u32 4, %s15
        %s138 = ssub.s32 6, %s137
        %p139 = scmp.lt.s32.totalorder %s138, 4
        %s140 = scalar_select %p139, %s138, 4
        %s141 = smul.u32 128, %s140
        %s142 = smul.u32 4, %s15
        %s143 = ssub.s32 6, %s142
        %p144 = scmp.lt.s32.totalorder %s143, 4
        %s145 = scalar_select %p144, %s143, 4
        %s146 = smul.u32 128, %s145
        %v147 = vld [vmem:[%s119] sm:$0xff]
        %v148 = vld [vmem:[%s119 + $0x8] sm:$0xff]
        %v149 = vld [vmem:[%s119 + $0x10] sm:$0xff]
        %v150 = vld [vmem:[%s119 + $0x18] sm:$0xff]
        %vm151 = vcmp.gt.f32.partialorder %v147, 0.0
        %vm152 = vcmp.gt.f32.partialorder %v148, 0.0
        %vm153 = vcmp.gt.f32.partialorder %v149, 0.0
        %vm154 = vcmp.gt.f32.partialorder %v150, 0.0
        %v155 = vsel %vm151, 1, 0
        %v156 = vsel %vm152, 1, 0
        %v157 = vsel %vm153, 1, 0
        %v158 = vsel %vm154, 1, 0
        %159 = vst [vmem:[%s136] sm:$0xff] %v155
        %160 = vst [vmem:[%s136 + $0x8] sm:$0xff] %v156
        %161 = vst [vmem:[%s136 + $0x10] sm:$0xff] %v157
        %162 = vst [vmem:[%s136 + $0x18] sm:$0xff] %v158
        %s163 = sand.u32 %s49, 1
        %s164 = sand.u32 %s49, 1
        %s165 = smul.addr %s164, 32
        %s166 = scalar_lea.vmem [#allocation4], %s165
        // Predicated region
        $region29: #{tpu_custom_call.1} parent=23 // pred_check
          %p167 = pneg %p59
        $region30: #{tpu_custom_call.1} parent=23 // pred_check_branch
          %169 = sbr.rel (%p167) target = $region32
        $region31: #{tpu_custom_call.1} parent=23 // pred_region
          %s170 = smul.u32 4, %s15
          %s171 = ssub.s32 6, %s170
          %p172 = scmp.lt.s32.totalorder %s171, 4
          %s173 = scalar_select %p172, %s171, 4
          %s174 = smul.u32 128, %s173
          %p175 = scmp.ne.s32.totalorder 0, %s174
          %s176 = smul.addr %s170, 8
          %s177 = scalar_lea.vmem %s1, %s176
          // Predicated region
          $region33: #{tpu_custom_call.1} parent=31 // pred_check
            %p178 = pneg %p175
          $region34: #{tpu_custom_call.1} parent=31 // pred_check_branch
            %180 = sbr.rel (%p178) target = $region36
          $region35: #{tpu_custom_call.1} parent=31 // pred_region
            // Predicated region
            $region37: #{tpu_custom_call.1} parent=35 // pred_check
              _
            $region38: #{tpu_custom_call.1} parent=35 // pred_check_branch
              %182 = sbr.rel (0) target = $region40
            $region39: #{tpu_custom_call.1} parent=35 // pred_region
              // Predicated region
              $region59: #{tpu_custom_call.1} parent=39 // pred_check
                _
              $region60: #{tpu_custom_call.1} parent=39 // pred_check_branch
                %237 = sbr.rel (0) target = $region62
              $region61: #{tpu_custom_call.1} parent=39 // pred_region
                %s238 = sshrl.u32 %s173, 2
                // While loop
                $region63: #{tpu_custom_call.1} parent=61 // loop_pre_header
                  _
                $region64: #{tpu_custom_call.1} parent=61 // loop_header
                  %s240 = sphi 0, %s242
                  %p241 = scmp.ge.s32.totalorder %s240, %s238
                  %s245 = sphi 0, %s258
                  %s246 = sphi %s166, %s261
                  %s247 = sphi %s177, %s262
                $region65: #{tpu_custom_call.1} parent=61 // loop_header_branch
                  %244 = sbr.rel (%p241) target = $region69
                $region66: #{tpu_custom_call.1} parent=61 // loop_body
                  %v248 = vld [vmem:[%s246] sm:$0xff]
                  %249 = vst [vmem:[%s247] sm:$0xff] %v248
                  %v250 = vld [vmem:[%s246 + $0x8] sm:$0xff]
                  %251 = vst [vmem:[%s247 + $0x8] sm:$0xff] %v250
                  %v252 = vld [vmem:[%s246 + $0x10] sm:$0xff]
                  %253 = vst [vmem:[%s247 + $0x10] sm:$0xff] %v252
                  %v254 = vld [vmem:[%s246 + $0x18] sm:$0xff]
                  %255 = vst [vmem:[%s247 + $0x18] sm:$0xff] %v254
                  %s256 = sadd.s32 1, %s245
                  %p257 = scmp.ge.s32.totalorder %s256, %s238
                  %s258 = scalar_select %p257, 0, %s256
                  %s259 = smul.u32 %s258, 32
                  %s260 = smul.u32 %s258, 32
                  %s261 = scalar_lea.vmem %s166, %s259 [#allocation4]
                  %s262 = scalar_lea.vmem %s177, %s260
                $region67: #{tpu_custom_call.1} parent=61 // loop_footer
                  %s242 = sadd.s32 %s240, 1
                $region68: #{tpu_custom_call.1} parent=61 // loop_footer_branch
                  %239 = sbr.rel target = $region64
                $region69: #{tpu_custom_call.1} parent=61 // loop_exit
                  _
                %s263 = sshrl.u32 %s173, 2
                %s264 = sand.u32 %s173, 3
                %s265 = smul.u32 %s263, 4
                %s266 = smul.u32 8, %s265
                %s267 = scalar_lea.vmem %s166, %s266 [#allocation4]
                %s268 = smul.u32 8, %s265
                %s269 = scalar_lea.vmem %s177, %s268
                // While loop
                $region70: #{tpu_custom_call.1} parent=61 // loop_pre_header
                  _
                $region71: #{tpu_custom_call.1} parent=61 // loop_header
                  %s271 = sphi 0, %s273
                  %p272 = scmp.ge.s32.totalorder %s271, %s264
                  %s276 = sphi 0, %s283
                  %s277 = sphi %s267, %s286
                  %s278 = sphi %s269, %s287
                $region72: #{tpu_custom_call.1} parent=61 // loop_header_branch
                  %275 = sbr.rel (%p272) target = $region76
                $region73: #{tpu_custom_call.1} parent=61 // loop_body
                  %v279 = vld [vmem:[%s277] sm:$0xff]
                  %280 = vst [vmem:[%s278] sm:$0xff] %v279
                  %s281 = sadd.s32 1, %s276
                  %p282 = scmp.ge.s32.totalorder %s281, %s264
                  %s283 = scalar_select %p282, 0, %s281
                  %s284 = smul.u32 %s283, 8
                  %s285 = smul.u32 %s283, 8
                  %s286 = scalar_lea.vmem %s267, %s284 [#allocation4]
                  %s287 = scalar_lea.vmem %s269, %s285
                $region74: #{tpu_custom_call.1} parent=61 // loop_footer
                  %s273 = sadd.s32 %s271, 1
                $region75: #{tpu_custom_call.1} parent=61 // loop_footer_branch
                  %270 = sbr.rel target = $region71
                $region76: #{tpu_custom_call.1} parent=61 // loop_exit
                  _
              $region62: #{tpu_custom_call.1} parent=39 // pred_fallthru
                _
              // Predicated region
              $region77: #{tpu_custom_call.1} parent=39 // pred_check
                _
              $region78: #{tpu_custom_call.1} parent=39 // pred_check_branch
                %289 = sbr.rel target = $region80
              $region79: #{tpu_custom_call.1} parent=39 // pred_region
                _
              $region80: #{tpu_custom_call.1} parent=39 // pred_fallthru
                _
            $region40: #{tpu_custom_call.1} parent=35 // pred_fallthru
              _
            // Predicated region
            $region41: #{tpu_custom_call.1} parent=35 // pred_check
              _
            $region42: #{tpu_custom_call.1} parent=35 // pred_check_branch
              %184 = sbr.rel target = $region44
            $region43: #{tpu_custom_call.1} parent=35 // pred_region
              %s186 = sshrl.u32 %s173, 2
              // While loop
              $region45: #{tpu_custom_call.1} parent=43 // loop_pre_header
                _
              $region46: #{tpu_custom_call.1} parent=43 // loop_header
                %s188 = sphi 0, %s190
                %p189 = scmp.ge.s32.totalorder %s188, %s186
                %s193 = sphi 0, %s206
                %s194 = sphi %s166, %s209
                %s195 = sphi %s177, %s210
              $region47: #{tpu_custom_call.1} parent=43 // loop_header_branch
                %192 = sbr.rel (%p189) target = $region51
              $region48: #{tpu_custom_call.1} parent=43 // loop_body
                %v196 = vld [vmem:[%s194] sm:$0xff]
                %197 = vst [vmem:[%s195] sm:$0xff] %v196
                %v198 = vld [vmem:[%s194 + $0x8] sm:$0xff]
                %199 = vst [vmem:[%s195 + $0x8] sm:$0xff] %v198
                %v200 = vld [vmem:[%s194 + $0x10] sm:$0xff]
                %201 = vst [vmem:[%s195 + $0x10] sm:$0xff] %v200
                %v202 = vld [vmem:[%s194 + $0x18] sm:$0xff]
                %203 = vst [vmem:[%s195 + $0x18] sm:$0xff] %v202
                %s204 = sadd.s32 1, %s193
                %p205 = scmp.ge.s32.totalorder %s204, %s186
                %s206 = scalar_select %p205, 0, %s204
                %s207 = smul.u32 %s206, 32
                %s208 = smul.u32 %s206, 32
                %s209 = scalar_lea.vmem %s166, %s207 [#allocation4]
                %s210 = scalar_lea.vmem %s177, %s208
              $region49: #{tpu_custom_call.1} parent=43 // loop_footer
                %s190 = sadd.s32 %s188, 1
              $region50: #{tpu_custom_call.1} parent=43 // loop_footer_branch
                %187 = sbr.rel target = $region46
              $region51: #{tpu_custom_call.1} parent=43 // loop_exit
                _
              %s211 = sshrl.u32 %s173, 2
              %s212 = sand.u32 %s173, 3
              %s213 = smul.u32 %s211, 4
              %s214 = smul.u32 8, %s213
              %s215 = scalar_lea.vmem %s166, %s214 [#allocation4]
              %s216 = smul.u32 8, %s213
              %s217 = scalar_lea.vmem %s177, %s216
              // While loop
              $region52: #{tpu_custom_call.1} parent=43 // loop_pre_header
                _
              $region53: #{tpu_custom_call.1} parent=43 // loop_header
                %s219 = sphi 0, %s221
                %p220 = scmp.ge.s32.totalorder %s219, %s212
                %s224 = sphi 0, %s231
                %s225 = sphi %s215, %s234
                %s226 = sphi %s217, %s235
              $region54: #{tpu_custom_call.1} parent=43 // loop_header_branch
                %223 = sbr.rel (%p220) target = $region58
              $region55: #{tpu_custom_call.1} parent=43 // loop_body
                %v227 = vld [vmem:[%s225] sm:$0xff]
                %228 = vst [vmem:[%s226] sm:$0xff] %v227
                %s229 = sadd.s32 1, %s224
                %p230 = scmp.ge.s32.totalorder %s229, %s212
                %s231 = scalar_select %p230, 0, %s229
                %s232 = smul.u32 %s231, 8
                %s233 = smul.u32 %s231, 8
                %s234 = scalar_lea.vmem %s215, %s232 [#allocation4]
                %s235 = scalar_lea.vmem %s217, %s233
              $region56: #{tpu_custom_call.1} parent=43 // loop_footer
                %s221 = sadd.s32 %s219, 1
              $region57: #{tpu_custom_call.1} parent=43 // loop_footer_branch
                %218 = sbr.rel target = $region53
              $region58: #{tpu_custom_call.1} parent=43 // loop_exit
                _
            $region44: #{tpu_custom_call.1} parent=35 // pred_fallthru
              _
          $region36: #{tpu_custom_call.1} parent=31 // pred_fallthru
            _
          %290 = vnop
        $region32: #{tpu_custom_call.1} parent=23 // pred_fallthru
          _
      $region24: #{tpu_custom_call.1} parent=5 // pred_fallthru
        _
      %p291 = scmp.le.s32.totalorder 2, %s10
      // Predicated region
      $region81: #{tpu_custom_call.1} parent=5 // pred_check
        %p292 = pneg %p291
      $region82: #{tpu_custom_call.1} parent=5 // pred_check_branch
        %294 = sbr.rel (%p292) target = $region84
      $region83: #{tpu_custom_call.1} parent=5 // pred_region
        %s295 = ssub.s32 %s10, 2
        // Predicated region
        $region85: #{tpu_custom_call.1} parent=83 // pred_check
          %p296 = pneg %p65
        $region86: #{tpu_custom_call.1} parent=83 // pred_check_branch
          %298 = sbr.rel (%p296) target = $region88
        $region87: #{tpu_custom_call.1} parent=83 // pred_region
          %s299 = sand.u32 %s50, 1
          %s300 = sand.u32 %s50, 1
          %s301 = smul.addr %s300, 32
          %s302 = scalar_lea.vmem [#allocation4], %s301
        $region88: #{tpu_custom_call.1} parent=83 // pred_fallthru
          _
      $region84: #{tpu_custom_call.1} parent=5 // pred_fallthru
        _
    $region6: #{tpu_custom_call.1} parent=1 // loop_footer
      %s14 = sadd.s32 1, %s10
    $region7: #{tpu_custom_call.1} parent=1 // loop_footer_branch
      %9 = sbr.rel target = $region3
    $region8: #{tpu_custom_call.1} parent=1 // loop_exit
      _
    %303 = vsyncpa [#allocation3], 1
    %s304 = scalar_lea.sflag [#allocation3], 1
    %305 = vsyncpa %s304, 1

// kernel: tpu_custom_call.1
$region0: #{tpu_custom_call.1}
  #allocation0 [shape = 'u32[]', space=smem, size = 0x4, offset = 0x4, fixed_abs, tag = 'smem constant byte address 0x4 - core index']
  #allocation1 [shape = 'u32[144,128]{1,0:T(1,128)}', space=vmem, size = 0x12000, scoped, tag = 'internal scratch']
  %s0 = inlined_call_operand.hbm [shape: f32[16,128], index: 0, kind: input, shape index: {}]
  %s1 = inlined_call_operand.hbm [shape: f32[16,128], index: 1, kind: input, shape index: {}]
  %s2 = inlined_call_operand.hbm [shape: f32[16,128], index: 2, kind: output, shape index: {0}]
  %s3 = inlined_call_operand.hbm [shape: f32[16,128], index: 3, kind: output, shape index: {1}]
  %s4 = inlined_call_operand.hbm [shape: f32[16,128], index: 4, kind: output, shape index: {2}]
  %s5 = inlined_call_operand.hbm [shape: f32[16,128], index: 5, kind: output, shape index: {3}]
  %s6 = inlined_call_operand.hbm [shape: s8[16,128], index: 6, kind: output, shape index: {4}]
  %s7 = inlined_call_operand.hbm [shape: s8[16,128], index: 7, kind: output, shape index: {5}]
  %s8 = inlined_call_operand.hbm [shape: s8[16,128], index: 8, kind: output, shape index: {6}]
  %9 = xla_tuple %s2, %s3, %s4, %s5, %s6, %s7, %s8
  %s10 = sld [smem:[#allocation0]]
  $region74: #{tpu_custom_call.1} parent=0
    _
  %s12 = ssub.s32 1, %s10
  %s13 = scalar_select 0, %s12, %s10
  $region1: #{tpu_custom_call.1} parent=0
    #allocation2 [shape = 'u8[16384]{0}', space=vmem, size = 0x4000, scoped, tag = 'input window, operand 0, single buffered']
    #allocation3 [shape = 's32[1]{0}', space=sflag, size = 0x4, scoped, tag = 'scoped memory for tpu_custom_call.1']
    #allocation4 [shape = 's32[1]{0}', space=sflag, size = 0x4, scoped, tag = 'scoped memory for tpu_custom_call.1']
    #allocation5 [shape = 'u8[16384]{0}', space=vmem, size = 0x4000, scoped, tag = 'input window, operand 1, single buffered']
    #allocation6 [shape = 's32[1]{0}', space=sflag, size = 0x4, scoped, tag = 'scoped memory for tpu_custom_call.1']
    #allocation7 [shape = 'u8[16384]{0}', space=vmem, size = 0x4000, scoped, tag = 'output window, operand 0, single buffered']
    #allocation8 [shape = 'u8[16384]{0}', space=vmem, size = 0x4000, scoped, tag = 'output window, operand 1, single buffered']
    #allocation9 [shape = 's32[1]{0}', space=sflag, size = 0x4, scoped, tag = 'scoped memory for tpu_custom_call.1']
    #allocation10 [shape = 'u8[16384]{0}', space=vmem, size = 0x4000, scoped, tag = 'output window, operand 2, single buffered']
    #allocation11 [shape = 'u8[16384]{0}', space=vmem, size = 0x4000, scoped, tag = 'output window, operand 3, single buffered']
    #allocation12 [shape = 's32[1]{0}', space=sflag, size = 0x4, scoped, tag = 'scoped memory for tpu_custom_call.1']
    #allocation13 [shape = 'u8[4096]{0}', space=vmem, size = 0x1000, scoped, tag = 'output window, operand 4, single buffered']
    #allocation14 [shape = 'u8[4096]{0}', space=vmem, size = 0x1000, scoped, tag = 'output window, operand 5, single buffered']
    #allocation15 [shape = 's32[1]{0}', space=sflag, size = 0x4, scoped, tag = 'scoped memory for tpu_custom_call.1']
    #allocation16 [shape = 'u8[4096]{0}', space=vmem, size = 0x1000, scoped, tag = 'output window, operand 6, single buffered']
    %14 = vsyncpa [#allocation3], 0
    %15 = vsyncpa [#allocation6], 0
    %16 = vsyncpa [#allocation4], 0
    %17 = vsyncpa [#allocation9], 0
    %18 = vsyncpa [#allocation12], 0
    %19 = vsyncpa [#allocation15], 0
    // Predicated region
    $region2: #{tpu_custom_call.1} parent=1 // pred_check
      _
    $region3: #{tpu_custom_call.1} parent=1 // pred_check_branch
      %21 = sbr.rel (0) target = $region5
    $region4: #{tpu_custom_call.1} parent=1 // pred_region
      %s23 = ssub.s32 512, 256
      %24 = vsyncadd [#allocation3], %s23
      %s25 = sshll.u32 [#allocation2], 4
      %s26 = int_to_ptr.vmem [resolvable:$true] %s25
      %31 = dma.hbm_to_vmem [thread:$0]  %s0, 256, %s26, [#allocation3], 128, 128, 8
    $region5: #{tpu_custom_call.1} parent=1 // pred_fallthru
      _
    // Predicated region
    $region6: #{tpu_custom_call.1} parent=1 // pred_check
      _
    $region7: #{tpu_custom_call.1} parent=1 // pred_check_branch
      %33 = sbr.rel (0) target = $region9
    $region8: #{tpu_custom_call.1} parent=1 // pred_region
      %s35 = ssub.s32 512, 256
      %36 = vsyncadd [#allocation6], %s35
      %s37 = sshll.u32 [#allocation5], 4
      %s38 = int_to_ptr.vmem [resolvable:$true] %s37
      %43 = dma.hbm_to_vmem [thread:$0]  %s1, 256, %s38, [#allocation6], 128, 128, 8
    $region9: #{tpu_custom_call.1} parent=1 // pred_fallthru
      _
    // Predicated region
    $region10: #{tpu_custom_call.1} parent=1 // pred_check
      _
    $region11: #{tpu_custom_call.1} parent=1 // pred_check_branch
      %45 = sbr.rel (0) target = $region13
    $region12: #{tpu_custom_call.1} parent=1 // pred_region
      %46 = dma.done [#allocation3], 512
    $region13: #{tpu_custom_call.1} parent=1 // pred_fallthru
      _
    // Predicated region
    $region14: #{tpu_custom_call.1} parent=1 // pred_check
      _
    $region15: #{tpu_custom_call.1} parent=1 // pred_check_branch
      %48 = sbr.rel (0) target = $region17
    $region16: #{tpu_custom_call.1} parent=1 // pred_region
      %49 = dma.done [#allocation6], 512
    $region17: #{tpu_custom_call.1} parent=1 // pred_fallthru
      _
    %v52 = vld [vmem:[#allocation2] sm:$0xff]
    %v53 = vld [vmem:[#allocation2 + $0x8] sm:$0xff]
    %v54 = vld [vmem:[#allocation2 + $0x10] sm:$0xff]
    %v55 = vld [vmem:[#allocation2 + $0x18] sm:$0xff]
    %v56 = vld [vmem:[#allocation5] sm:$0xff]
    %v57 = vld [vmem:[#allocation5 + $0x8] sm:$0xff]
    %v58 = vld [vmem:[#allocation5 + $0x10] sm:$0xff]
    %v59 = vld [vmem:[#allocation5 + $0x18] sm:$0xff]
    %v60 = vadd.f32 %v52, %v56
    %v61 = vadd.f32 %v53, %v57
    %v62 = vadd.f32 %v54, %v58
    %v63 = vadd.f32 %v55, %v59
    %64 = vst [vmem:[#allocation7] sm:$0xff] %v60
    %65 = vst [vmem:[#allocation7 + $0x8] sm:$0xff] %v61
    %66 = vst [vmem:[#allocation7 + $0x10] sm:$0xff] %v62
    %67 = vst [vmem:[#allocation7 + $0x18] sm:$0xff] %v63
    %v68 = vsub.f32 %v52, %v56
    %v69 = vsub.f32 %v53, %v57
    %v70 = vsub.f32 %v54, %v58
    %v71 = vsub.f32 %v55, %v59
    %72 = vst [vmem:[#allocation8] sm:$0xff] %v68
    %73 = vst [vmem:[#allocation8 + $0x8] sm:$0xff] %v69
    %74 = vst [vmem:[#allocation8 + $0x10] sm:$0xff] %v70
    %75 = vst [vmem:[#allocation8 + $0x18] sm:$0xff] %v71
    %v76 = vmul.f32 %v52, %v56
    %v77 = vmul.f32 %v53, %v57
    %v78 = vmul.f32 %v54, %v58
    %v79 = vmul.f32 %v55, %v59
    %80 = vst [vmem:[#allocation10] sm:$0xff] %v76
    %81 = vst [vmem:[#allocation10 + $0x8] sm:$0xff] %v77
    %82 = vst [vmem:[#allocation10 + $0x10] sm:$0xff] %v78
    %83 = vst [vmem:[#allocation10 + $0x18] sm:$0xff] %v79
    %v84 = vadd.f32 %v56, 1e-05
    %v85 = vadd.f32 %v57, 1e-05
    %v86 = vadd.f32 %v58, 1e-05
    %v87 = vadd.f32 %v59, 1e-05
    %v88 = vrcp.pop %v84
    %v89 = vmul.f32 %v52, %v88
    %v90 = vrcp.pop %v85
    %v91 = vmul.f32 %v53, %v90
    %v92 = vrcp.pop %v86
    %v93 = vmul.f32 %v54, %v92
    %v94 = vrcp.pop %v87
    %v95 = vmul.f32 %v55, %v94
    %96 = vst [vmem:[#allocation11] sm:$0xff] %v89
    %97 = vst [vmem:[#allocation11 + $0x8] sm:$0xff] %v91
    %98 = vst [vmem:[#allocation11 + $0x10] sm:$0xff] %v93
    %99 = vst [vmem:[#allocation11 + $0x18] sm:$0xff] %v95
    %vm100 = vcmp.gt.f32.partialorder %v52, %v56
    %vm101 = vcmp.gt.f32.partialorder %v53, %v57
    %vm102 = vcmp.gt.f32.partialorder %v54, %v58
    %vm103 = vcmp.gt.f32.partialorder %v55, %v59
    %vm104 = vmpackc.low %vm101, %vm100
    %vm105 = vmpackc.low %vm103, %vm102
    %vm106 = vmpackc.even %vm105, %vm104
    %v107 = vsel %vm106, 16843009, 0
    %v108 = vunpack.c.0.s8 %v107
    %v109 = vunpack.c.1.s8 %v107
    %v110 = vunpack.c.2.s8 %v107
    %v111 = vunpack.c.3.s8 %v107
    %v112 = vpack.c.b16 %v108, %v108
    %v113 = vpack.c.b8 %v112, %v112
    %v114 = vpack.c.b16 %v109, %v109
    %v115 = vpack.c.b8 %v114, %v114
    %v116 = vpack.c.b16 %v110, %v110
    %v117 = vpack.c.b8 %v116, %v116
    %v118 = vpack.c.b16 %v111, %v111
    %v119 = vpack.c.b8 %v118, %v118
    %120 = vst [vmem:[#allocation13] sm:$0x3] %v113
    %121 = vst [vmem:[#allocation13 + $0x2] sm:$0x3] %v115
    %122 = vst [vmem:[#allocation13 + $0x4] sm:$0x3] %v117
    %123 = vst [vmem:[#allocation13 + $0x6] sm:$0x3] %v119
    %vm124 = vcmp.lt.f32.partialorder %v52, %v56
    %vm125 = vcmp.lt.f32.partialorder %v53, %v57
    %vm126 = vcmp.lt.f32.partialorder %v54, %v58
    %vm127 = vcmp.lt.f32.partialorder %v55, %v59
    %vm128 = vmpackc.low %vm125, %vm124
    %vm129 = vmpackc.low %vm127, %vm126
    %vm130 = vmpackc.even %vm129, %vm128
    %v131 = vsel %vm130, 16843009, 0
    %v132 = vunpack.c.0.s8 %v131
    %v133 = vunpack.c.1.s8 %v131
    %v134 = vunpack.c.2.s8 %v131
    %v135 = vunpack.c.3.s8 %v131
    %v136 = vpack.c.b16 %v132, %v132
    %v137 = vpack.c.b8 %v136, %v136
    %v138 = vpack.c.b16 %v133, %v133
    %v139 = vpack.c.b8 %v138, %v138
    %v140 = vpack.c.b16 %v134, %v134
    %v141 = vpack.c.b8 %v140, %v140
    %v142 = vpack.c.b16 %v135, %v135
    %v143 = vpack.c.b8 %v142, %v142
    %144 = vst [vmem:[#allocation14] sm:$0x3] %v137
    %145 = vst [vmem:[#allocation14 + $0x2] sm:$0x3] %v139
    %146 = vst [vmem:[#allocation14 + $0x4] sm:$0x3] %v141
    %147 = vst [vmem:[#allocation14 + $0x6] sm:$0x3] %v143
    %vm148 = vcmp.eq.f32.partialorder %v52, %v56
    %vm149 = vcmp.eq.f32.partialorder %v53, %v57
    %vm150 = vcmp.eq.f32.partialorder %v54, %v58
    %vm151 = vcmp.eq.f32.partialorder %v55, %v59
    %vm152 = vmpackc.low %vm149, %vm148
    %vm153 = vmpackc.low %vm151, %vm150
    %vm154 = vmpackc.even %vm153, %vm152
    %v155 = vsel %vm154, 16843009, 0
    %v156 = vunpack.c.0.s8 %v155
    %v157 = vunpack.c.1.s8 %v155
    %v158 = vunpack.c.2.s8 %v155
    %v159 = vunpack.c.3.s8 %v155
    %v160 = vpack.c.b16 %v156, %v156
    %v161 = vpack.c.b8 %v160, %v160
    %v162 = vpack.c.b16 %v157, %v157
    %v163 = vpack.c.b8 %v162, %v162
    %v164 = vpack.c.b16 %v158, %v158
    %v165 = vpack.c.b8 %v164, %v164
    %v166 = vpack.c.b16 %v159, %v159
    %v167 = vpack.c.b8 %v166, %v166
    %168 = vst [vmem:[#allocation16] sm:$0x3] %v161
    %169 = vst [vmem:[#allocation16 + $0x2] sm:$0x3] %v163
    %170 = vst [vmem:[#allocation16 + $0x4] sm:$0x3] %v165
    %171 = vst [vmem:[#allocation16 + $0x6] sm:$0x3] %v167
    // Predicated region
    $region18: #{tpu_custom_call.1} parent=1 // pred_check
      _
    $region19: #{tpu_custom_call.1} parent=1 // pred_check_branch
      %173 = sbr.rel (0) target = $region21
    $region20: #{tpu_custom_call.1} parent=1 // pred_region
      %s175 = ssub.s32 512, 256
      %176 = vsyncadd [#allocation4], %s175
      %s177 = sshll.u32 [#allocation7], 4
      %s178 = int_to_ptr.vmem [resolvable:$true] %s177
      %183 = dma.vmem_to_hbm [thread:$0]  %s178, 256, %s2, [#allocation4], 128, 128, 8
    $region21: #{tpu_custom_call.1} parent=1 // pred_fallthru
      _
    // Predicated region
    $region22: #{tpu_custom_call.1} parent=1 // pred_check
      _
    $region23: #{tpu_custom_call.1} parent=1 // pred_check_branch
      %185 = sbr.rel (0) target = $region25
    $region24: #{tpu_custom_call.1} parent=1 // pred_region
      %s187 = ssub.s32 512, 256
      %188 = vsyncadd [#allocation9], %s187
      %s189 = sshll.u32 [#allocation8], 4
      %s190 = int_to_ptr.vmem [resolvable:$true] %s189
      %195 = dma.vmem_to_hbm [thread:$0]  %s190, 256, %s3, [#allocation9], 128, 128, 8
    $region25: #{tpu_custom_call.1} parent=1 // pred_fallthru
      _
    // Predicated region
    $region26: #{tpu_custom_call.1} parent=1 // pred_check
      _
    $region27: #{tpu_custom_call.1} parent=1 // pred_check_branch
      %197 = sbr.rel (0) target = $region29
    $region28: #{tpu_custom_call.1} parent=1 // pred_region
      %s199 = ssub.s32 512, 256
      %200 = vsyncadd [#allocation9], %s199
      %s201 = sshll.u32 [#allocation10], 4
      %s202 = int_to_ptr.vmem [resolvable:$true] %s201
      %207 = dma.vmem_to_hbm [thread:$0]  %s202, 256, %s4, [#allocation9], 128, 128, 8
    $region29: #{tpu_custom_call.1} parent=1 // pred_fallthru
      _
    // Predicated region
    $region30: #{tpu_custom_call.1} parent=1 // pred_check
      _
    $region31: #{tpu_custom_call.1} parent=1 // pred_check_branch
      %209 = sbr.rel (0) target = $region33
    $region32: #{tpu_custom_call.1} parent=1 // pred_region
      %s211 = ssub.s32 512, 256
      %212 = vsyncadd [#allocation12], %s211
      %s213 = sshll.u32 [#allocation11], 4
      %s214 = int_to_ptr.vmem [resolvable:$true] %s213
      %219 = dma.vmem_to_hbm [thread:$0]  %s214, 256, %s5, [#allocation12], 128, 128, 8
    $region33: #{tpu_custom_call.1} parent=1 // pred_fallthru
      _
    // Predicated region
    $region34: #{tpu_custom_call.1} parent=1 // pred_check
      _
    $region35: #{tpu_custom_call.1} parent=1 // pred_check_branch
      %221 = sbr.rel (0) target = $region37
    $region36: #{tpu_custom_call.1} parent=1 // pred_region
      %s223 = ssub.s32 128, 64
      %224 = vsyncadd [#allocation12], %s223
      %s225 = sshll.u32 [#allocation13], 4
      %s226 = int_to_ptr.vmem [resolvable:$true] %s225
      %231 = dma.vmem_to_hbm [thread:$0]  %s226, 64, %s6, [#allocation12], 32, 32, 2
    $region37: #{tpu_custom_call.1} parent=1 // pred_fallthru
      _
    // Predicated region
    $region38: #{tpu_custom_call.1} parent=1 // pred_check
      _
    $region39: #{tpu_custom_call.1} parent=1 // pred_check_branch
      %233 = sbr.rel (0) target = $region41
    $region40: #{tpu_custom_call.1} parent=1 // pred_region
      %s235 = ssub.s32 128, 64
      %236 = vsyncadd [#allocation15], %s235
      %s237 = sshll.u32 [#allocation14], 4
      %s238 = int_to_ptr.vmem [resolvable:$true] %s237
      %243 = dma.vmem_to_hbm [thread:$0]  %s238, 64, %s7, [#allocation15], 32, 32, 2
    $region41: #{tpu_custom_call.1} parent=1 // pred_fallthru
      _
    // Predicated region
    $region42: #{tpu_custom_call.1} parent=1 // pred_check
      _
    $region43: #{tpu_custom_call.1} parent=1 // pred_check_branch
      %245 = sbr.rel (0) target = $region45
    $region44: #{tpu_custom_call.1} parent=1 // pred_region
      %s247 = ssub.s32 128, 64
      %248 = vsyncadd [#allocation15], %s247
      %s249 = sshll.u32 [#allocation16], 4
      %s250 = int_to_ptr.vmem [resolvable:$true] %s249
      %255 = dma.vmem_to_hbm [thread:$0]  %s250, 64, %s8, [#allocation15], 32, 32, 2
    $region45: #{tpu_custom_call.1} parent=1 // pred_fallthru
      _
    // Predicated region
    $region46: #{tpu_custom_call.1} parent=1 // pred_check
      _
    $region47: #{tpu_custom_call.1} parent=1 // pred_check_branch
      %257 = sbr.rel (0) target = $region49
    $region48: #{tpu_custom_call.1} parent=1 // pred_region
      %258 = dma.done [#allocation4], 512
    $region49: #{tpu_custom_call.1} parent=1 // pred_fallthru
      _
    // Predicated region
    $region50: #{tpu_custom_call.1} parent=1 // pred_check
      _
    $region51: #{tpu_custom_call.1} parent=1 // pred_check_branch
      %260 = sbr.rel (0) target = $region53
    $region52: #{tpu_custom_call.1} parent=1 // pred_region
      %261 = dma.done [#allocation9], 512
    $region53: #{tpu_custom_call.1} parent=1 // pred_fallthru
      _
    // Predicated region
    $region54: #{tpu_custom_call.1} parent=1 // pred_check
      _
    $region55: #{tpu_custom_call.1} parent=1 // pred_check_branch
      %263 = sbr.rel (0) target = $region57
    $region56: #{tpu_custom_call.1} parent=1 // pred_region
      %264 = dma.done [#allocation9], 512
    $region57: #{tpu_custom_call.1} parent=1 // pred_fallthru
      _
    // Predicated region
    $region58: #{tpu_custom_call.1} parent=1 // pred_check
      _
    $region59: #{tpu_custom_call.1} parent=1 // pred_check_branch
      %266 = sbr.rel (0) target = $region61
    $region60: #{tpu_custom_call.1} parent=1 // pred_region
      %267 = dma.done [#allocation12], 512
    $region61: #{tpu_custom_call.1} parent=1 // pred_fallthru
      _
    // Predicated region
    $region62: #{tpu_custom_call.1} parent=1 // pred_check
      _
    $region63: #{tpu_custom_call.1} parent=1 // pred_check_branch
      %269 = sbr.rel (0) target = $region65
    $region64: #{tpu_custom_call.1} parent=1 // pred_region
      %270 = dma.done [#allocation12], 128
    $region65: #{tpu_custom_call.1} parent=1 // pred_fallthru
      _
    // Predicated region
    $region66: #{tpu_custom_call.1} parent=1 // pred_check
      _
    $region67: #{tpu_custom_call.1} parent=1 // pred_check_branch
      %272 = sbr.rel (0) target = $region69
    $region68: #{tpu_custom_call.1} parent=1 // pred_region
      %273 = dma.done [#allocation15], 128
    $region69: #{tpu_custom_call.1} parent=1 // pred_fallthru
      _
    // Predicated region
    $region70: #{tpu_custom_call.1} parent=1 // pred_check
      _
    $region71: #{tpu_custom_call.1} parent=1 // pred_check_branch
      %275 = sbr.rel (0) target = $region73
    $region72: #{tpu_custom_call.1} parent=1 // pred_region
      %276 = dma.done [#allocation15], 128
    $region73: #{tpu_custom_call.1} parent=1 // pred_fallthru
      _
    %277 = vsyncpa [#allocation3], 1
    %278 = vsyncpa [#allocation6], 1
    %279 = vsyncpa [#allocation4], 1
    %280 = vsyncpa [#allocation9], 1
    %281 = vsyncpa [#allocation12], 1
    %282 = vsyncpa [#allocation15], 1

</llo_original>
